<compile_context>
chip_gen: v7x
topology: tpu7x:2x2x1
jax: 0.10.0
libtpu: 0.0.40
codegen_flags: <defaults>
</compile_context>

<pallas_src>
import functools

import jax
import jax.numpy as jnp
import numpy as np
from jax import lax
from jax.experimental import pallas as pl
from jax.experimental.pallas import tpu as pltpu

EPS = 1e-5
_TAPS = tuple((dy, dx) for dy in (-1, 0, 1) for dx in (-1, 0, 1))


def _conv3x3_cp(act, w_packed, masks, wo):
    """3x3 conv (padding=1) on a (C, P) channel-major / pixel-on-lane slab.

    act:      (Cin, P) f32, P = N*Ho*Wo flattened row-major as (n, i, j).
    w_packed: (Cout, 9*Cin) bf16, K ordered tap-major / channel-minor.
    masks:    (9, P) f32 zero-padding boundary masks (one row per tap).
    returns:  (Cout, P) f32.
    """
    _, p = act.shape
    blocks = []
    for t, (dy, dx) in enumerate(_TAPS):
        delta = dy * wo + dx                 # flattened pixel offset of this tap
        shift = (-delta) % p                 # jnp.roll semantics: y[i] = x[i-shift]
        shifted = pltpu.roll(act, shift, 1) if shift else act
        blocks.append(shifted * masks[t:t + 1, :])     # zero the padded border
    patch = jnp.concatenate(blocks, axis=0)            # (9*Cin, P) f32
    # One MXU matmul per conv: K = 9*Cin, bf16 operands, f32 accumulation.
    return jnp.dot(w_packed, patch.astype(jnp.bfloat16),
                   preferred_element_type=jnp.float32)


def _bn_relu_cp(y, gamma, beta):
    """Training-mode BatchNorm2d (biased batch stats over pixels) + ReLU.

    Folded into one per-channel scale/shift FMA.  y: (C, P) f32; gamma, beta:
    (C, 1) f32.  (The conv bias is omitted upstream: it is exactly cancelled
    by the mean subtraction here.)
    """
    p = y.shape[1]
    mean = jnp.sum(y, axis=1, keepdims=True) * (1.0 / p)
    var = jnp.sum(jnp.square(y - mean), axis=1, keepdims=True) * (1.0 / p)
    scale = gamma * lax.rsqrt(var + EPS)
    shift = beta - scale * mean
    return jnp.maximum(y * scale + shift, 0.0)


def down_kernel(xs_ref, msk_ref, w1_ref, g1_ref, be1_ref,
                w2_ref, g2_ref, be2_ref, o_ref, *, wo):
    # xs_ref: (4, Cin, P) f32 — the four 2x2 pooling taps, already in the
    #         channels-on-sublane / pixels-on-lane compute layout.
    masks = msk_ref[...]                               # (9, P) f32, shared by both convs
    pooled = jnp.max(xs_ref[...], axis=0)              # MaxPool2d(2) -> (Cin, P)

    y = _conv3x3_cp(pooled, w1_ref[...], masks, wo)    # Conv2d(in_ch, out_ch, 3, pad=1)
    y = _bn_relu_cp(y, g1_ref[...], be1_ref[...])      # BatchNorm2d + ReLU
    y = _conv3x3_cp(y, w2_ref[...], masks, wo)         # Conv2d(out_ch, out_ch, 3, pad=1)
    y = _bn_relu_cp(y, g2_ref[...], be2_ref[...])      # BatchNorm2d + ReLU

    o_ref[...] = y.astype(o_ref.dtype)                 # lane-dense (Cout, P) store


def _pack_weight(w_oihw):
    """(Cout, Cin, 3, 3) OIHW -> (Cout, 9*Cin) bf16, K ordered tap-major."""
    co, ci, kh, kw = w_oihw.shape
    return jnp.transpose(w_oihw, (0, 2, 3, 1)).reshape(co, kh * kw * ci).astype(
        jnp.bfloat16)


def _boundary_masks(n, ho, wo):
    """(9, P) f32: mask[t, p] = 1 iff tap t of output pixel p is in-bounds."""
    pix = np.arange(n * ho * wo)
    i = (pix // wo) % ho
    j = pix % wo
    rows = []
    for dy, dx in _TAPS:
        ok = (i + dy >= 0) & (i + dy < ho) & (j + dx >= 0) & (j + dx < wo)
        rows.append(ok.astype(np.float32))
    return jnp.asarray(np.stack(rows, axis=0))


def down_forward(x_nchw, params):
    """PyTorch-style NCHW in / NCHW out; fused Pallas kernel in (C, P) layout."""
    n, ci, h, w = x_nchw.shape
    assert h % 2 == 0 and w % 2 == 0
    ho, wo = h // 2, w // 2
    p = n * ho * wo
    co = params["w2"].shape[0]

    x = x_nchw.astype(jnp.float32)
    # Layout glue (one XLA gather pass): the four 2x2-pool taps, each emitted
    # directly in the kernel's channel-major, pixel-flattened layout.
    xs = jnp.stack(
        [jnp.transpose(x[:, :, di::2, dj::2], (1, 0, 2, 3)).reshape(ci, p)
         for di in (0, 1) for dj in (0, 1)],
        axis=0)                                        # (4, Cin, P)

    masks = _boundary_masks(n, ho, wo)                 # (9, P) f32
    args = (
        xs, masks,
        _pack_weight(params["w1"]),                    # (Cout, 9*Cin) bf16
        params["g1"].reshape(co, 1).astype(jnp.float32),
        params["be1"].reshape(co, 1).astype(jnp.float32),
        _pack_weight(params["w2"]),                    # (Cout, 9*Cout) bf16
        params["g2"].reshape(co, 1).astype(jnp.float32),
        params["be2"].reshape(co, 1).astype(jnp.float32),
    )
    # NOTE: conv biases b1/b2 are intentionally NOT passed — a per-channel bias
    # added before training-mode BatchNorm is exactly cancelled by the batch
    # mean subtraction (dead work; see reference check below).

    out_cp = pl.pallas_call(
        functools.partial(down_kernel, wo=wo),
        out_shape=jax.ShapeDtypeStruct((co, p), x.dtype),
        in_specs=[pl.BlockSpec(memory_space=pltpu.MemorySpace.VMEM)] * len(args),
        out_specs=pl.BlockSpec(memory_space=pltpu.MemorySpace.VMEM),
        compiler_params=pltpu.CompilerParams(
            vmem_limit_bytes=32 * 1024 * 1024),
    )(*args)

    # Lane-dense (Cout, P) slab -> NCHW.
    return jnp.transpose(out_cp.reshape(co, n, ho, wo), (1, 0, 2, 3))


def ref_forward(x_nchw, params):
    """Independent pure-JAX reference (reduce_window + lax.conv), NCHW/OIHW.

    Conv inputs are cast to bf16 with f32 accumulation to match the kernel's
    MXU precision choice; all other math is f32.  Conv biases ARE applied
    here, demonstrating that dropping them in the kernel is exact.
    """
    x = x_nchw.astype(jnp.float32)
    pooled = lax.reduce_window(x, -jnp.inf, lax.max,
                               (1, 1, 2, 2), (1, 1, 2, 2), "VALID")

    def conv(y, w, b):
        out = lax.conv_general_dilated(
            y.astype(jnp.bfloat16), w.astype(jnp.bfloat16), (1, 1), "SAME",
            dimension_numbers=("NCHW", "OIHW", "NCHW"),
            preferred_element_type=jnp.float32)
        return out + b.reshape(1, -1, 1, 1)

    def bn_relu(y, g, be):
        mean = jnp.mean(y, axis=(0, 2, 3), keepdims=True)
        var = jnp.mean(jnp.square(y - mean), axis=(0, 2, 3), keepdims=True)
        yn = (y - mean) * lax.rsqrt(var + EPS)
        return jnp.maximum(
            yn * g.reshape(1, -1, 1, 1) + be.reshape(1, -1, 1, 1), 0.0)

    y = bn_relu(conv(pooled, params["w1"], params["b1"]),
                params["g1"], params["be1"])
    y = bn_relu(conv(y, params["w2"], params["b2"]),
                params["g2"], params["be2"])
    return y


if __name__ == "__main__":
    key = jax.random.PRNGKey(0)
    ks = jax.random.split(key, 9)

    in_ch, out_ch = 4, 8
    N, H, W = 2, 16, 16          # -> P = N * (H//2) * (W//2) = 128 pixels

    x = jax.random.normal(ks[0], (N, in_ch, H, W), jnp.float32)

    # PyTorch-style parameters: conv weights OIHW, per-channel 1-D vectors.
    params = {
        "w1": 0.2 * jax.random.normal(ks[1], (out_ch, in_ch, 3, 3), jnp.float32),
        "b1": 0.1 * jax.random.normal(ks[2], (out_ch,), jnp.float32),
        "g1": 1.0 + 0.1 * jax.random.normal(ks[3], (out_ch,), jnp.float32),
        "be1": 0.1 * jax.random.normal(ks[4], (out_ch,), jnp.float32),
        "w2": 0.2 * jax.random.normal(ks[5], (out_ch, out_ch, 3, 3), jnp.float32),
        "b2": 0.1 * jax.random.normal(ks[6], (out_ch,), jnp.float32),
        "g2": 1.0 + 0.1 * jax.random.normal(ks[7], (out_ch,), jnp.float32),
        "be2": 0.1 * jax.random.normal(ks[8], (out_ch,), jnp.float32),
    }

    out = jax.block_until_ready(down_forward(x, params))
    assert out.shape == (N, out_ch, H // 2, W // 2), out.shape

    ref = jax.block_until_ready(ref_forward(x, params))
    # Kernel (bf16 MXU operands, f32 accum) vs matched bf16-conv reference:
    # only summation-order / reduction-order differences remain.  (The bf16
    # MXU choice itself deviates from a full-f32 HIGHEST conv by ~1e-2, an
    # accepted accuracy/perf trade per the review.)
    np.testing.assert_allclose(np.asarray(out), np.asarray(ref),
                               atol=5e-3, rtol=5e-3)

    print("KERNEL_OK")
</pallas_src>

<mosaic_0001>
module attributes {stable_mosaic.version = 11 : i64} {
  func.func @down_kernel(%arg0: memref<4x4x128xf32, #tpu.memory_space<vmem>>, %arg1: memref<9x128xf32, #tpu.memory_space<vmem>>, %arg2: memref<8x36xbf16, #tpu.memory_space<vmem>>, %arg3: memref<8x1xf32, #tpu.memory_space<vmem>>, %arg4: memref<8x1xf32, #tpu.memory_space<vmem>>, %arg5: memref<8x72xbf16, #tpu.memory_space<vmem>>, %arg6: memref<8x1xf32, #tpu.memory_space<vmem>>, %arg7: memref<8x1xf32, #tpu.memory_space<vmem>>, %arg8: memref<8x128xf32, #tpu.memory_space<vmem>>) attributes {dimension_semantics = [], scalar_prefetch = 0 : i64, scratch_operands = 0 : i64, tpu.core_type = #tpu.core_type<tc>} {
    %c0 = arith.constant 0 : index
    %c0_0 = arith.constant 0 : index
    %0 = vector.load %arg1[%c0, %c0_0] : memref<9x128xf32, #tpu.memory_space<vmem>>, vector<9x128xf32>
    %c0_1 = arith.constant 0 : index
    %c0_2 = arith.constant 0 : index
    %c0_3 = arith.constant 0 : index
    %1 = vector.load %arg0[%c0_1, %c0_2, %c0_3] : memref<4x4x128xf32, #tpu.memory_space<vmem>>, vector<4x4x128xf32>
    %cst = arith.constant dense<0xFF800000> : vector<4x128xf32>
    %2 = vector.multi_reduction <maximumf>, %1, %cst [0] : vector<4x4x128xf32> to vector<4x128xf32>
    %c0_4 = arith.constant 0 : index
    %c0_5 = arith.constant 0 : index
    %3 = vector.load %arg2[%c0_4, %c0_5] : memref<8x36xbf16, #tpu.memory_space<vmem>>, vector<8x36xbf16>
    %c9_i32 = arith.constant 9 : i32
    %4 = tpu.dynamic_rotate %2 by %c9_i32 dim 1 : vector<4x128xf32>, i32 -> vector<4x128xf32>
    %5 = vector.extract_strided_slice %0 {offsets = [0, 0], sizes = [1, 128], strides = [1, 1]} : vector<9x128xf32> to vector<1x128xf32>
    %6 = vector.broadcast %5 : vector<1x128xf32> to vector<4x128xf32>
    %7 = arith.mulf %4, %6 : vector<4x128xf32>
    %c8_i32 = arith.constant 8 : i32
    %8 = tpu.dynamic_rotate %2 by %c8_i32 dim 1 : vector<4x128xf32>, i32 -> vector<4x128xf32>
    %9 = vector.extract_strided_slice %0 {offsets = [1, 0], sizes = [1, 128], strides = [1, 1]} : vector<9x128xf32> to vector<1x128xf32>
    %10 = vector.broadcast %9 : vector<1x128xf32> to vector<4x128xf32>
    %11 = arith.mulf %8, %10 : vector<4x128xf32>
    %c7_i32 = arith.constant 7 : i32
    %12 = tpu.dynamic_rotate %2 by %c7_i32 dim 1 : vector<4x128xf32>, i32 -> vector<4x128xf32>
    %13 = vector.extract_strided_slice %0 {offsets = [2, 0], sizes = [1, 128], strides = [1, 1]} : vector<9x128xf32> to vector<1x128xf32>
    %14 = vector.broadcast %13 : vector<1x128xf32> to vector<4x128xf32>
    %15 = arith.mulf %12, %14 : vector<4x128xf32>
    %c1_i32 = arith.constant 1 : i32
    %16 = tpu.dynamic_rotate %2 by %c1_i32 dim 1 : vector<4x128xf32>, i32 -> vector<4x128xf32>
    %17 = vector.extract_strided_slice %0 {offsets = [3, 0], sizes = [1, 128], strides = [1, 1]} : vector<9x128xf32> to vector<1x128xf32>
    %18 = vector.broadcast %17 : vector<1x128xf32> to vector<4x128xf32>
    %19 = arith.mulf %16, %18 : vector<4x128xf32>
    %20 = vector.extract_strided_slice %0 {offsets = [4, 0], sizes = [1, 128], strides = [1, 1]} : vector<9x128xf32> to vector<1x128xf32>
    %21 = vector.broadcast %20 : vector<1x128xf32> to vector<4x128xf32>
    %22 = arith.mulf %2, %21 : vector<4x128xf32>
    %c127_i32 = arith.constant 127 : i32
    %23 = tpu.dynamic_rotate %2 by %c127_i32 dim 1 : vector<4x128xf32>, i32 -> vector<4x128xf32>
    %24 = vector.extract_strided_slice %0 {offsets = [5, 0], sizes = [1, 128], strides = [1, 1]} : vector<9x128xf32> to vector<1x128xf32>
    %25 = vector.broadcast %24 : vector<1x128xf32> to vector<4x128xf32>
    %26 = arith.mulf %23, %25 : vector<4x128xf32>
    %c121_i32 = arith.constant 121 : i32
    %27 = tpu.dynamic_rotate %2 by %c121_i32 dim 1 : vector<4x128xf32>, i32 -> vector<4x128xf32>
    %28 = vector.extract_strided_slice %0 {offsets = [6, 0], sizes = [1, 128], strides = [1, 1]} : vector<9x128xf32> to vector<1x128xf32>
    %29 = vector.broadcast %28 : vector<1x128xf32> to vector<4x128xf32>
    %30 = arith.mulf %27, %29 : vector<4x128xf32>
    %c120_i32 = arith.constant 120 : i32
    %31 = tpu.dynamic_rotate %2 by %c120_i32 dim 1 : vector<4x128xf32>, i32 -> vector<4x128xf32>
    %32 = vector.extract_strided_slice %0 {offsets = [7, 0], sizes = [1, 128], strides = [1, 1]} : vector<9x128xf32> to vector<1x128xf32>
    %33 = vector.broadcast %32 : vector<1x128xf32> to vector<4x128xf32>
    %34 = arith.mulf %31, %33 : vector<4x128xf32>
    %c119_i32 = arith.constant 119 : i32
    %35 = tpu.dynamic_rotate %2 by %c119_i32 dim 1 : vector<4x128xf32>, i32 -> vector<4x128xf32>
    %36 = vector.extract_strided_slice %0 {offsets = [8, 0], sizes = [1, 128], strides = [1, 1]} : vector<9x128xf32> to vector<1x128xf32>
    %37 = vector.broadcast %36 : vector<1x128xf32> to vector<4x128xf32>
    %38 = arith.mulf %35, %37 : vector<4x128xf32>
    %39 = tpu.concatenate %7, %11, %15, %19, %22, %26, %30, %34, %38 in 0 : vector<4x128xf32>, vector<4x128xf32>, vector<4x128xf32>, vector<4x128xf32>, vector<4x128xf32>, vector<4x128xf32>, vector<4x128xf32>, vector<4x128xf32>, vector<4x128xf32> -> vector<36x128xf32>
    %40 = arith.truncf %39 : vector<36x128xf32> to vector<36x128xbf16>
    %cst_6 = arith.constant dense<0.000000e+00> : vector<8x128xf32>
    %41 = tpu.matmul %3, %40, %cst_6 {dimension_numbers = #tpu.dot_dimension_numbers<[1], [0], [0], [1], [0, 0, 1, 1], [], []>} : vector<8x36xbf16>, vector<36x128xbf16>, vector<8x128xf32> -> vector<8x128xf32>
    %c0_7 = arith.constant 0 : index
    %c0_8 = arith.constant 0 : index
    %42 = vector.load %arg3[%c0_7, %c0_8] : memref<8x1xf32, #tpu.memory_space<vmem>>, vector<8x1xf32>
    %c0_9 = arith.constant 0 : index
    %c0_10 = arith.constant 0 : index
    %43 = vector.load %arg4[%c0_9, %c0_10] : memref<8x1xf32, #tpu.memory_space<vmem>>, vector<8x1xf32>
    %cst_11 = arith.constant dense<0.000000e+00> : vector<8xf32>
    %44 = vector.multi_reduction <add>, %41, %cst_11 [1] : vector<8x128xf32> to vector<8xf32>
    %45 = vector.shape_cast %44 : vector<8xf32> to vector<8x1xf32>
    %cst_12 = arith.constant 7.812500e-03 : f32
    %46 = vector.broadcast %cst_12 : f32 to vector<8x1xf32>
    %47 = arith.mulf %45, %46 : vector<8x1xf32>
    %48 = vector.broadcast %47 : vector<8x1xf32> to vector<8x128xf32>
    %49 = arith.subf %41, %48 : vector<8x128xf32>
    %50 = arith.mulf %49, %49 : vector<8x128xf32>
    %cst_13 = arith.constant dense<0.000000e+00> : vector<8xf32>
    %51 = vector.multi_reduction <add>, %50, %cst_13 [1] : vector<8x128xf32> to vector<8xf32>
    %52 = vector.shape_cast %51 : vector<8xf32> to vector<8x1xf32>
    %cst_14 = arith.constant 7.812500e-03 : f32
    %53 = vector.broadcast %cst_14 : f32 to vector<8x1xf32>
    %54 = arith.mulf %52, %53 : vector<8x1xf32>
    %cst_15 = arith.constant 9.99999974E-6 : f32
    %55 = vector.broadcast %cst_15 : f32 to vector<8x1xf32>
    %56 = arith.addf %54, %55 : vector<8x1xf32>
    %57 = math.rsqrt %56 : vector<8x1xf32>
    %58 = arith.mulf %42, %57 : vector<8x1xf32>
    %59 = arith.mulf %58, %47 : vector<8x1xf32>
    %60 = arith.subf %43, %59 : vector<8x1xf32>
    %61 = vector.broadcast %58 : vector<8x1xf32> to vector<8x128xf32>
    %62 = arith.mulf %41, %61 : vector<8x128xf32>
    %63 = vector.broadcast %60 : vector<8x1xf32> to vector<8x128xf32>
    %64 = arith.addf %62, %63 : vector<8x128xf32>
    %cst_16 = arith.constant 0.000000e+00 : f32
    %65 = vector.broadcast %cst_16 : f32 to vector<8x128xf32>
    %66 = arith.maximumf %64, %65 : vector<8x128xf32>
    %c0_17 = arith.constant 0 : index
    %c0_18 = arith.constant 0 : index
    %67 = vector.load %arg5[%c0_17, %c0_18] : memref<8x72xbf16, #tpu.memory_space<vmem>>, vector<8x72xbf16>
    %c9_i32_19 = arith.constant 9 : i32
    %68 = tpu.dynamic_rotate %66 by %c9_i32_19 dim 1 : vector<8x128xf32>, i32 -> vector<8x128xf32>
    %69 = vector.extract_strided_slice %0 {offsets = [0, 0], sizes = [1, 128], strides = [1, 1]} : vector<9x128xf32> to vector<1x128xf32>
    %70 = vector.broadcast %69 : vector<1x128xf32> to vector<8x128xf32>
    %71 = arith.mulf %68, %70 : vector<8x128xf32>
    %c8_i32_20 = arith.constant 8 : i32
    %72 = tpu.dynamic_rotate %66 by %c8_i32_20 dim 1 : vector<8x128xf32>, i32 -> vector<8x128xf32>
    %73 = vector.extract_strided_slice %0 {offsets = [1, 0], sizes = [1, 128], strides = [1, 1]} : vector<9x128xf32> to vector<1x128xf32>
    %74 = vector.broadcast %73 : vector<1x128xf32> to vector<8x128xf32>
    %75 = arith.mulf %72, %74 : vector<8x128xf32>
    %c7_i32_21 = arith.constant 7 : i32
    %76 = tpu.dynamic_rotate %66 by %c7_i32_21 dim 1 : vector<8x128xf32>, i32 -> vector<8x128xf32>
    %77 = vector.extract_strided_slice %0 {offsets = [2, 0], sizes = [1, 128], strides = [1, 1]} : vector<9x128xf32> to vector<1x128xf32>
    %78 = vector.broadcast %77 : vector<1x128xf32> to vector<8x128xf32>
    %79 = arith.mulf %76, %78 : vector<8x128xf32>
    %c1_i32_22 = arith.constant 1 : i32
    %80 = tpu.dynamic_rotate %66 by %c1_i32_22 dim 1 : vector<8x128xf32>, i32 -> vector<8x128xf32>
    %81 = vector.extract_strided_slice %0 {offsets = [3, 0], sizes = [1, 128], strides = [1, 1]} : vector<9x128xf32> to vector<1x128xf32>
    %82 = vector.broadcast %81 : vector<1x128xf32> to vector<8x128xf32>
    %83 = arith.mulf %80, %82 : vector<8x128xf32>
    %84 = vector.extract_strided_slice %0 {offsets = [4, 0], sizes = [1, 128], strides = [1, 1]} : vector<9x128xf32> to vector<1x128xf32>
    %85 = vector.broadcast %84 : vector<1x128xf32> to vector<8x128xf32>
    %86 = arith.mulf %66, %85 : vector<8x128xf32>
    %c127_i32_23 = arith.constant 127 : i32
    %87 = tpu.dynamic_rotate %66 by %c127_i32_23 dim 1 : vector<8x128xf32>, i32 -> vector<8x128xf32>
    %88 = vector.extract_strided_slice %0 {offsets = [5, 0], sizes = [1, 128], strides = [1, 1]} : vector<9x128xf32> to vector<1x128xf32>
    %89 = vector.broadcast %88 : vector<1x128xf32> to vector<8x128xf32>
    %90 = arith.mulf %87, %89 : vector<8x128xf32>
    %c121_i32_24 = arith.constant 121 : i32
    %91 = tpu.dynamic_rotate %66 by %c121_i32_24 dim 1 : vector<8x128xf32>, i32 -> vector<8x128xf32>
    %92 = vector.extract_strided_slice %0 {offsets = [6, 0], sizes = [1, 128], strides = [1, 1]} : vector<9x128xf32> to vector<1x128xf32>
    %93 = vector.broadcast %92 : vector<1x128xf32> to vector<8x128xf32>
    %94 = arith.mulf %91, %93 : vector<8x128xf32>
    %c120_i32_25 = arith.constant 120 : i32
    %95 = tpu.dynamic_rotate %66 by %c120_i32_25 dim 1 : vector<8x128xf32>, i32 -> vector<8x128xf32>
    %96 = vector.extract_strided_slice %0 {offsets = [7, 0], sizes = [1, 128], strides = [1, 1]} : vector<9x128xf32> to vector<1x128xf32>
    %97 = vector.broadcast %96 : vector<1x128xf32> to vector<8x128xf32>
    %98 = arith.mulf %95, %97 : vector<8x128xf32>
    %c119_i32_26 = arith.constant 119 : i32
    %99 = tpu.dynamic_rotate %66 by %c119_i32_26 dim 1 : vector<8x128xf32>, i32 -> vector<8x128xf32>
    %100 = vector.extract_strided_slice %0 {offsets = [8, 0], sizes = [1, 128], strides = [1, 1]} : vector<9x128xf32> to vector<1x128xf32>
    %101 = vector.broadcast %100 : vector<1x128xf32> to vector<8x128xf32>
    %102 = arith.mulf %99, %101 : vector<8x128xf32>
    %103 = tpu.concatenate %71, %75, %79, %83, %86, %90, %94, %98, %102 in 0 : vector<8x128xf32>, vector<8x128xf32>, vector<8x128xf32>, vector<8x128xf32>, vector<8x128xf32>, vector<8x128xf32>, vector<8x128xf32>, vector<8x128xf32>, vector<8x128xf32> -> vector<72x128xf32>
    %104 = arith.truncf %103 : vector<72x128xf32> to vector<72x128xbf16>
    %cst_27 = arith.constant dense<0.000000e+00> : vector<8x128xf32>
    %105 = tpu.matmul %67, %104, %cst_27 {dimension_numbers = #tpu.dot_dimension_numbers<[1], [0], [0], [1], [0, 0, 1, 1], [], []>} : vector<8x72xbf16>, vector<72x128xbf16>, vector<8x128xf32> -> vector<8x128xf32>
    %c0_28 = arith.constant 0 : index
    %c0_29 = arith.constant 0 : index
    %106 = vector.load %arg6[%c0_28, %c0_29] : memref<8x1xf32, #tpu.memory_space<vmem>>, vector<8x1xf32>
    %c0_30 = arith.constant 0 : index
    %c0_31 = arith.constant 0 : index
    %107 = vector.load %arg7[%c0_30, %c0_31] : memref<8x1xf32, #tpu.memory_space<vmem>>, vector<8x1xf32>
    %cst_32 = arith.constant dense<0.000000e+00> : vector<8xf32>
    %108 = vector.multi_reduction <add>, %105, %cst_32 [1] : vector<8x128xf32> to vector<8xf32>
    %109 = vector.shape_cast %108 : vector<8xf32> to vector<8x1xf32>
    %cst_33 = arith.constant 7.812500e-03 : f32
    %110 = vector.broadcast %cst_33 : f32 to vector<8x1xf32>
    %111 = arith.mulf %109, %110 : vector<8x1xf32>
    %112 = vector.broadcast %111 : vector<8x1xf32> to vector<8x128xf32>
    %113 = arith.subf %105, %112 : vector<8x128xf32>
    %114 = arith.mulf %113, %113 : vector<8x128xf32>
    %cst_34 = arith.constant dense<0.000000e+00> : vector<8xf32>
    %115 = vector.multi_reduction <add>, %114, %cst_34 [1] : vector<8x128xf32> to vector<8xf32>
    %116 = vector.shape_cast %115 : vector<8xf32> to vector<8x1xf32>
    %cst_35 = arith.constant 7.812500e-03 : f32
    %117 = vector.broadcast %cst_35 : f32 to vector<8x1xf32>
    %118 = arith.mulf %116, %117 : vector<8x1xf32>
    %cst_36 = arith.constant 9.99999974E-6 : f32
    %119 = vector.broadcast %cst_36 : f32 to vector<8x1xf32>
    %120 = arith.addf %118, %119 : vector<8x1xf32>
    %121 = math.rsqrt %120 : vector<8x1xf32>
    %122 = arith.mulf %106, %121 : vector<8x1xf32>
    %123 = arith.mulf %122, %111 : vector<8x1xf32>
    %124 = arith.subf %107, %123 : vector<8x1xf32>
    %125 = vector.broadcast %122 : vector<8x1xf32> to vector<8x128xf32>
    %126 = arith.mulf %105, %125 : vector<8x128xf32>
    %127 = vector.broadcast %124 : vector<8x1xf32> to vector<8x128xf32>
    %128 = arith.addf %126, %127 : vector<8x128xf32>
    %cst_37 = arith.constant 0.000000e+00 : f32
    %129 = vector.broadcast %cst_37 : f32 to vector<8x128xf32>
    %130 = arith.maximumf %128, %129 : vector<8x128xf32>
    %c0_38 = arith.constant 0 : index
    %c0_39 = arith.constant 0 : index
    %131 = vector.load %arg8[%c0_38, %c0_39] : memref<8x128xf32, #tpu.memory_space<vmem>>, vector<8x128xf32>
    tpu.vector_store %arg8[%c0_38, %c0_39], %130 {strides = array<i32>} : memref<8x128xf32, #tpu.memory_space<vmem>>, vector<8x128xf32>,
    return
  }
}

</mosaic_0001>

<llo_original>
// kernel: tpu_custom_call.1
$region0: #{tpu_custom_call.1}
  #allocation0 [shape = 'u32[]', space=smem, size = 0x4, offset = 0x4, fixed_abs, tag = 'smem constant byte address 0x4 - core index']
  #allocation1 [shape = 'u32[144,128]{1,0:T(1,128)}', space=vmem, size = 0x12000, scoped, tag = 'internal scratch']
  %s0 = inlined_call_operand.vmem [shape: f32[4,4,128], index: 0, kind: input, shape index: {}]
  %s1 = inlined_call_operand.vmem [shape: f32[9,128], index: 1, kind: input, shape index: {}]
  %s2 = inlined_call_operand.vmem [shape: bf16[8,36], index: 2, kind: input, shape index: {}]
  %s3 = inlined_call_operand.vmem [shape: f32[8,1], index: 3, kind: input, shape index: {}]
  %s4 = inlined_call_operand.vmem [shape: f32[8,1], index: 4, kind: input, shape index: {}]
  %s5 = inlined_call_operand.vmem [shape: bf16[8,72], index: 5, kind: input, shape index: {}]
  %s6 = inlined_call_operand.vmem [shape: f32[8,1], index: 6, kind: input, shape index: {}]
  %s7 = inlined_call_operand.vmem [shape: f32[8,1], index: 7, kind: input, shape index: {}]
  %s8 = inlined_call_operand.hbm [shape: f32[8,128], index: 8, kind: output, shape index: {}]
  %s9 = sld [smem:[#allocation0]]
  $region42: #{tpu_custom_call.1} parent=0
    _
  %s11 = ssub.s32 1, %s9
  %s12 = scalar_select 0, %s11, %s9
  $region1: #{tpu_custom_call.1} parent=0
    #allocation2 [shape = 'u8[4096]{0}', space=vmem, size = 0x1000, scoped, tag = 'output window, operand 0, single buffered']
    #allocation3 [shape = 's32[1]{0}', space=sflag, size = 0x4, scoped, tag = 'scoped memory for tpu_custom_call.1']
    %13 = vsyncpa [#allocation3], 0
    // Predicated region
    $region2: #{tpu_custom_call.1} parent=1 // pred_check
      _
    $region3: #{tpu_custom_call.1} parent=1 // pred_check_branch
      %15 = sbr.rel (0) target = $region5
    $region4: #{tpu_custom_call.1} parent=1 // pred_region
      _
    $region5: #{tpu_custom_call.1} parent=1 // pred_fallthru
      _
    // Predicated region
    $region6: #{tpu_custom_call.1} parent=1 // pred_check
      _
    $region7: #{tpu_custom_call.1} parent=1 // pred_check_branch
      %17 = sbr.rel (0) target = $region9
    $region8: #{tpu_custom_call.1} parent=1 // pred_region
      _
    $region9: #{tpu_custom_call.1} parent=1 // pred_fallthru
      _
    // Predicated region
    $region10: #{tpu_custom_call.1} parent=1 // pred_check
      _
    $region11: #{tpu_custom_call.1} parent=1 // pred_check_branch
      %19 = sbr.rel (0) target = $region13
    $region12: #{tpu_custom_call.1} parent=1 // pred_region
      _
    $region13: #{tpu_custom_call.1} parent=1 // pred_fallthru
      _
    // Predicated region
    $region14: #{tpu_custom_call.1} parent=1 // pred_check
      _
    $region15: #{tpu_custom_call.1} parent=1 // pred_check_branch
      %21 = sbr.rel (0) target = $region17
    $region16: #{tpu_custom_call.1} parent=1 // pred_region
      _
    $region17: #{tpu_custom_call.1} parent=1 // pred_fallthru
      _
    // Predicated region
    $region18: #{tpu_custom_call.1} parent=1 // pred_check
      _
    $region19: #{tpu_custom_call.1} parent=1 // pred_check_branch
      %23 = sbr.rel (0) target = $region21
    $region20: #{tpu_custom_call.1} parent=1 // pred_region
      _
    $region21: #{tpu_custom_call.1} parent=1 // pred_fallthru
      _
    // Predicated region
    $region22: #{tpu_custom_call.1} parent=1 // pred_check
      _
    $region23: #{tpu_custom_call.1} parent=1 // pred_check_branch
      %25 = sbr.rel (0) target = $region25
    $region24: #{tpu_custom_call.1} parent=1 // pred_region
      _
    $region25: #{tpu_custom_call.1} parent=1 // pred_fallthru
      _
    // Predicated region
    $region26: #{tpu_custom_call.1} parent=1 // pred_check
      _
    $region27: #{tpu_custom_call.1} parent=1 // pred_check_branch
      %27 = sbr.rel (0) target = $region29
    $region28: #{tpu_custom_call.1} parent=1 // pred_region
      _
    $region29: #{tpu_custom_call.1} parent=1 // pred_fallthru
      _
    // Predicated region
    $region30: #{tpu_custom_call.1} parent=1 // pred_check
      _
    $region31: #{tpu_custom_call.1} parent=1 // pred_check_branch
      %29 = sbr.rel (0) target = $region33
    $region32: #{tpu_custom_call.1} parent=1 // pred_region
      _
    $region33: #{tpu_custom_call.1} parent=1 // pred_fallthru
      _
    %v31 = vld [vmem:[%s1] sm:$0xff]
    %v32 = vld [vmem:[%s1 + $0x8] sm:$0x1]
    %v33 = vld [vmem:[%s0] sm:$0xf]
    %v34 = vld [vmem:[%s0 + $0x4] sm:$0xf]
    %v35 = vld [vmem:[%s0 + $0x8] sm:$0xf]
    %v36 = vld [vmem:[%s0 + $0xc] sm:$0xf]
    %vm37 = vcmask 1043456
    %v38 = vsel %vm37, %v33, -inf
    %v39 = vsel %vm37, %v34, -inf
    %v40 = vsel %vm37, %v35, -inf
    %v41 = vsel %vm37, %v36, -inf
    %v42 = vmax.f32 %v38, %v39
    %v43 = vmax.f32 %v40, %v41
    %v44 = vmax.f32 %v42, %v43
    %v45 = vld [vmem:[%s2] sm:$0xf]
    %46 = vrot.lane.b32.xlu0 %v44, 9
    %v47 = vpop.permute.xlu0 %46
    %v48 = vlaneseq
    %v49 = vshrl.u32 %v48, 7
    %v50 = vsub.s32 0, %v49
    %v51 = vrot.slane %v31, %v50
    %v52 = vmul.f32 %v47, %v51
    %53 = vrot.lane.b32.xlu0 %v44, 8
    %v54 = vpop.permute.xlu0 %53
    %v55 = vlaneseq
    %v56 = vshrl.u32 %v55, 7
    %v57 = vsub.s32 1, %v56
    %v58 = vrot.slane %v31, %v57
    %v59 = vmul.f32 %v54, %v58
    %60 = vrot.lane.b32.xlu0 %v44, 7
    %v61 = vpop.permute.xlu0 %60
    %v62 = vlaneseq
    %v63 = vshrl.u32 %v62, 7
    %v64 = vsub.s32 2, %v63
    %v65 = vrot.slane %v31, %v64
    %v66 = vmul.f32 %v61, %v65
    %67 = vrot.lane.b32.xlu0 %v44, 1
    %v68 = vpop.permute.xlu0 %67
    %v69 = vlaneseq
    %v70 = vshrl.u32 %v69, 7
    %v71 = vsub.s32 3, %v70
    %v72 = vrot.slane %v31, %v71
    %v73 = vmul.f32 %v68, %v72
    %v74 = vlaneseq
    %v75 = vshrl.u32 %v74, 7
    %v76 = vsub.s32 4, %v75
    %v77 = vrot.slane %v31, %v76
    %v78 = vmul.f32 %v44, %v77
    %79 = vrot.lane.b32.xlu0 %v44, 127
    %v80 = vpop.permute.xlu0 %79
    %v81 = vlaneseq
    %v82 = vshrl.u32 %v81, 7
    %v83 = vsub.s32 5, %v82
    %v84 = vrot.slane %v31, %v83
    %v85 = vmul.f32 %v80, %v84
    %86 = vrot.lane.b32.xlu0 %v44, 121
    %v87 = vpop.permute.xlu0 %86
    %v88 = vlaneseq
    %v89 = vshrl.u32 %v88, 7
    %v90 = vsub.s32 6, %v89
    %v91 = vrot.slane %v31, %v90
    %v92 = vmul.f32 %v87, %v91
    %93 = vrot.lane.b32.xlu0 %v44, 120
    %v94 = vpop.permute.xlu0 %93
    %v95 = vlaneseq
    %v96 = vshrl.u32 %v95, 7
    %v97 = vsub.s32 7, %v96
    %v98 = vrot.slane %v31, %v97
    %v99 = vmul.f32 %v94, %v98
    %100 = vrot.lane.b32.xlu0 %v44, 119
    %v101 = vpop.permute.xlu0 %100
    %v102 = vlaneseq
    %v103 = vshrl.u32 %v102, 7
    %v104 = vsub.s32 0, %v103
    %v105 = vrot.slane %v32, %v104
    %v106 = vmul.f32 %v101, %v105
    %v108 = vrot.slane %v59, 4
    %v111 = vrot.slane %v73, 4
    %v114 = vrot.slane %v85, 4
    %v117 = vrot.slane %v99, 4
    %v119 = vsel %vm37, %v52, %v108
    %v120 = vsel %vm37, %v66, %v111
    %v121 = vsel %vm37, %v78, %v114
    %v122 = vsel %vm37, %v92, %v117
    %v123 = vpack.c.bf16 %v120, %v119
    %v124 = vpack.c.bf16 %v122, %v121
    %v125 = vpack.c.bf16 %v106, %v106
    %vm126 = vcmask 293888
    %v128 = vsel %vm126, %v45, 0
    %vm130 = vcmask 1041408
    %v132 = vsel %vm130, %v125, 0
    %134 = vmatprep.subr.bf16.mxu0 0
    %135 = vmatpush1.bf16.msra.mxu0 %v123
    %136 = vmatprep.subr.bf16.mxu0 0
    %137 = vmatpush1.bf16.msra.mxu0 %v124
    %138 = vmatprep.subr.bf16.mxu0 0
    %139 = vmatpush1.bf16.msra.mxu0 %v132
    %140 = vmatprep.subr.bf16.mxu0 0
    %141 = vmatpush1.bf16.msra.mxu0 0
    %142 = vmatprep.subr.bf16.mxu0 0
    %143 = vmatpush1.bf16.msra.mxu0 0
    %144 = vmatprep.subr.bf16.mxu0 0
    %145 = vmatpush1.bf16.msra.mxu0 0
    %146 = vmatprep.subr.bf16.mxu0 0
    %147 = vmatpush1.bf16.msra.mxu0 0
    %148 = vmatprep.subr.bf16.mxu0 0
    %149 = vmatpush1.bf16.msra.mxu0 0
    %150 = vmatprep.subr.bf16.mxu0 0
    %151 = vmatpush1.bf16.msra.mxu0 0
    %152 = vmatprep.subr.bf16.mxu0 0
    %153 = vmatpush1.bf16.msra.mxu0 0
    %154 = vmatprep.subr.bf16.mxu0 0
    %155 = vmatpush1.bf16.msra.mxu0 0
    %156 = vmatprep.subr.bf16.mxu0 0
    %157 = vmatpush1.bf16.msra.mxu0 0
    %158 = vmatprep.subr.bf16.mxu0 0
    %159 = vmatpush1.bf16.msra.mxu0 0
    %160 = vmatprep.subr.bf16.mxu0 0
    %161 = vmatpush1.bf16.msra.mxu0 0
    %162 = vmatprep.subr.bf16.mxu0 0
    %163 = vmatpush1.bf16.msra.mxu0 0
    %164 = vmatprep.subr.bf16.mxu0 0
    %165 = vmatpush1.bf16.msra.mxu0 0
    %166 = vmatprep.mubr.bf16.mxu0 0
    %167 = vmatmul.mubr.bf16.gmra.mrb[0].mxu0 %v128
    %v168 = vpop.f32.mrb[0].mxu0
    %v169 = vadd.f32 0.0, %v168
    %v170 = vpop.f32.mrb[0].mxu0
    %v171 = vpop.f32.mrb[0].mxu0
    %v172 = vpop.f32.mrb[0].mxu0
    %173 = vdwg.mxu0
    %v174 = vld [vmem:[%s3] sm:$0xff]
    %v175 = vld [vmem:[%s4] sm:$0xff]
    %176 = vadd.xlane.f32.xlu0 %v169
    %v177 = vpop.xlane.xlu0 %176
    %v178 = vmul.f32 %v177, 0.0078125
    %v179 = vsub.f32 %v169, %v178
    %v180 = vmul.f32 %v179, %v179
    %181 = vadd.xlane.f32.xlu0 %v180
    %v182 = vpop.xlane.xlu0 %181
    %v183 = vmul.f32 %v182, 0.0078125
    %v184 = vadd.f32 %v183, 1e-05
    %v185 = vrsqrt.pop %v184
    %v186 = vmul.f32 %v174, %v185
    %v187 = vmul.f32 %v186, %v178
    %v188 = vsub.f32 %v175, %v187
    %190 = vset.pattern.permute.xlu0 0
    %191 = vperm.xlu0 %190, %v186
    %v192 = vpop.permute.xlu0 %191
    %v194 = vmul.f32 %v169, %v192
    %196 = vset.pattern.permute.xlu0 0
    %197 = vperm.xlu0 %196, %v188
    %v198 = vpop.permute.xlu0 %197
    %v200 = vadd.f32 %v194, %v198
    %v201 = vmax.f32 %v200, 0.0
    %v202 = vld [vmem:[%s5] sm:$0xf]
    %203 = vrot.lane.b32.xlu0 %v201, 9
    %v204 = vpop.permute.xlu0 %203
    %v205 = vmul.f32 %v204, %v51
    %206 = vrot.lane.b32.xlu0 %v201, 8
    %v207 = vpop.permute.xlu0 %206
    %v208 = vmul.f32 %v207, %v58
    %209 = vrot.lane.b32.xlu0 %v201, 7
    %v210 = vpop.permute.xlu0 %209
    %v211 = vmul.f32 %v210, %v65
    %212 = vrot.lane.b32.xlu0 %v201, 1
    %v213 = vpop.permute.xlu0 %212
    %v214 = vmul.f32 %v213, %v72
    %v215 = vmul.f32 %v201, %v77
    %216 = vrot.lane.b32.xlu0 %v201, 127
    %v217 = vpop.permute.xlu0 %216
    %v218 = vmul.f32 %v217, %v84
    %219 = vrot.lane.b32.xlu0 %v201, 121
    %v220 = vpop.permute.xlu0 %219
    %v221 = vmul.f32 %v220, %v91
    %222 = vrot.lane.b32.xlu0 %v201, 120
    %v223 = vpop.permute.xlu0 %222
    %v224 = vmul.f32 %v223, %v98
    %225 = vrot.lane.b32.xlu0 %v201, 119
    %v226 = vpop.permute.xlu0 %225
    %v227 = vmul.f32 %v226, %v105
    %v228 = vpack.c.bf16 %v208, %v205
    %v229 = vpack.c.bf16 %v214, %v211
    %v230 = vpack.c.bf16 %v218, %v215
    %v231 = vpack.c.bf16 %v224, %v221
    %v232 = vpack.c.bf16 %v227, %v227
    %vm233 = vcmask 588800
    %v235 = vsel %vm233, %v202, 0
    %v238 = vsel %vm37, %v232, 0
    %240 = vmatprep.subr.bf16.mxu0 0
    %241 = vmatpush1.bf16.msra.mxu0 %v228
    %242 = vmatprep.subr.bf16.mxu0 0
    %243 = vmatpush1.bf16.msra.mxu0 %v229
    %244 = vmatprep.subr.bf16.mxu0 0
    %245 = vmatpush1.bf16.msra.mxu0 %v230
    %246 = vmatprep.subr.bf16.mxu0 0
    %247 = vmatpush1.bf16.msra.mxu0 %v231
    %248 = vmatprep.subr.bf16.mxu0 0
    %249 = vmatpush1.bf16.msra.mxu0 %v238
    %250 = vmatprep.subr.bf16.mxu0 0
    %251 = vmatpush1.bf16.msra.mxu0 0
    %252 = vmatprep.subr.bf16.mxu0 0
    %253 = vmatpush1.bf16.msra.mxu0 0
    %254 = vmatprep.subr.bf16.mxu0 0
    %255 = vmatpush1.bf16.msra.mxu0 0
    %256 = vmatprep.subr.bf16.mxu0 0
    %257 = vmatpush1.bf16.msra.mxu0 0
    %258 = vmatprep.subr.bf16.mxu0 0
    %259 = vmatpush1.bf16.msra.mxu0 0
    %260 = vmatprep.subr.bf16.mxu0 0
    %261 = vmatpush1.bf16.msra.mxu0 0
    %262 = vmatprep.subr.bf16.mxu0 0
    %263 = vmatpush1.bf16.msra.mxu0 0
    %264 = vmatprep.subr.bf16.mxu0 0
    %265 = vmatpush1.bf16.msra.mxu0 0
    %266 = vmatprep.subr.bf16.mxu0 0
    %267 = vmatpush1.bf16.msra.mxu0 0
    %268 = vmatprep.subr.bf16.mxu0 0
    %269 = vmatpush1.bf16.msra.mxu0 0
    %270 = vmatprep.subr.bf16.mxu0 0
    %271 = vmatpush1.bf16.msra.mxu0 0
    %272 = vmatprep.mubr.bf16.mxu0 0
    %273 = vmatmul.mubr.bf16.gmra.mrb[0].mxu0 %v235
    %v274 = vpop.f32.mrb[0].mxu0
    %v275 = vadd.f32 0.0, %v274
    %v276 = vpop.f32.mrb[0].mxu0
    %v277 = vpop.f32.mrb[0].mxu0
    %v278 = vpop.f32.mrb[0].mxu0
    %279 = vdwg.mxu0
    %v280 = vld [vmem:[%s6] sm:$0xff]
    %v281 = vld [vmem:[%s7] sm:$0xff]
    %282 = vadd.xlane.f32.xlu0 %v275
    %v283 = vpop.xlane.xlu0 %282
    %v284 = vmul.f32 %v283, 0.0078125
    %v285 = vsub.f32 %v275, %v284
    %v286 = vmul.f32 %v285, %v285
    %287 = vadd.xlane.f32.xlu0 %v286
    %v288 = vpop.xlane.xlu0 %287
    %v289 = vmul.f32 %v288, 0.0078125
    %v290 = vadd.f32 %v289, 1e-05
    %v291 = vrsqrt.pop %v290
    %v292 = vmul.f32 %v280, %v291
    %v293 = vmul.f32 %v292, %v284
    %v294 = vsub.f32 %v281, %v293
    %296 = vset.pattern.permute.xlu0 0
    %297 = vperm.xlu0 %296, %v292
    %v298 = vpop.permute.xlu0 %297
    %v300 = vmul.f32 %v275, %v298
    %302 = vset.pattern.permute.xlu0 0
    %303 = vperm.xlu0 %302, %v294
    %v304 = vpop.permute.xlu0 %303
    %v306 = vadd.f32 %v300, %v304
    %v307 = vmax.f32 %v306, 0.0
    %308 = vst [vmem:[#allocation2] sm:$0xff] %v307
    // Predicated region
    $region34: #{tpu_custom_call.1} parent=1 // pred_check
      _
    $region35: #{tpu_custom_call.1} parent=1 // pred_check_branch
      %310 = sbr.rel (0) target = $region37
    $region36: #{tpu_custom_call.1} parent=1 // pred_region
      %s312 = ssub.s32 128, 128
      %313 = vsyncadd [#allocation3], %s312
      %s315 = sshll.u32 [#allocation2], 4
      %s316 = int_to_ptr.vmem [resolvable:$true] %s315
      %318 = dma.vmem_to_hbm [thread:$0]  %s316, 128, %s8, [#allocation3]
    $region37: #{tpu_custom_call.1} parent=1 // pred_fallthru
      _
    // Predicated region
    $region38: #{tpu_custom_call.1} parent=1 // pred_check
      _
    $region39: #{tpu_custom_call.1} parent=1 // pred_check_branch
      %320 = sbr.rel (0) target = $region41
    $region40: #{tpu_custom_call.1} parent=1 // pred_region
      %321 = dma.done [#allocation3], 128
    $region41: #{tpu_custom_call.1} parent=1 // pred_fallthru
      _
    %322 = vsyncpa [#allocation3], 1

</llo_original>
